<compile_context>
chip_gen: v7x
topology: tpu7x:2x2x1
jax: 0.10.0
libtpu: 0.0.40
codegen_flags: <defaults>
</compile_context>

<pallas_src>
import jax
import jax.numpy as jnp
import numpy as np
from jax import lax
from jax.experimental import pallas as pl
from jax.experimental.pallas import tpu as pltpu


# ---------------------------------------------------------------------------
# Kernel 1: 1x1-conv projections (feat_b, feat_c, feat_d), stored as bf16.
# ---------------------------------------------------------------------------
def _proj_kernel(x_ref, wb_ref, wc_ref, wd_ref, bb_ref, bc_ref, bd_ref,
                 fb_ref, fc_ref, fd_ref):
    # x_ref: (1, C, TP) channel-major tile (f32).
    x_cn = x_ref[0]                                     # (C, TP)
    x_rc = jnp.transpose(x_cn).astype(jnp.bfloat16)     # (TP, C) pixels-as-rows
    wb = wb_ref[...].astype(jnp.bfloat16)
    wc = wc_ref[...].astype(jnp.bfloat16)
    wd = wd_ref[...].astype(jnp.bfloat16)
    fb = jnp.dot(x_rc, wb, preferred_element_type=jnp.float32) + bb_ref[...]
    fc = jnp.dot(x_rc, wc, preferred_element_type=jnp.float32) + bc_ref[...]
    fd = jnp.dot(x_rc, wd, preferred_element_type=jnp.float32) + bd_ref[...]
    fb_ref[0] = fb.astype(jnp.bfloat16)                 # (TP, C8)
    fc_ref[0] = fc.astype(jnp.bfloat16)                 # (TP, C8)
    fd_ref[0] = fd.astype(jnp.bfloat16)                 # (TP, C)


# ---------------------------------------------------------------------------
# Kernel 2: flash-style position attention + residual.
# ---------------------------------------------------------------------------
def _pam_flash_kernel(alpha_ref,                        # SMEM (1,)
                      fb_ref, fc_ref, fd_ref, x_ref,    # VMEM tiles
                      out_ref,
                      m_scr, l_scr, acc_scr):
    ki = pl.program_id(2)

    @pl.when(ki == 0)
    def _init():
        m_scr[...] = jnp.full_like(m_scr, -jnp.inf)
        l_scr[...] = jnp.zeros_like(l_scr)
        acc_scr[...] = jnp.zeros_like(acc_scr)

    fb = fb_ref[0]                                      # (TQ, C8) bf16
    fc = fc_ref[0]                                      # (TK, C8) bf16
    fd = fd_ref[0]                                      # (TK, C)  bf16

    # energy[i, j] = <feat_b[i], feat_c[j]>: contract last dims, no transpose.
    energy = lax.dot_general(fb, fc, (((1,), (1,)), ((), ())),
                             preferred_element_type=jnp.float32)   # (TQ, TK)

    m_prev = m_scr[...]                                              # (TQ, 1)
    m_new = jnp.maximum(m_prev, jnp.max(energy, axis=-1, keepdims=True))
    corr = jnp.exp(m_prev - m_new)                                   # (TQ, 1)
    p = jnp.exp(energy - m_new)                                      # (TQ, TK) f32
    l_scr[...] = corr * l_scr[...] + jnp.sum(p, axis=-1, keepdims=True)
    acc_scr[...] = corr * acc_scr[...] + jnp.dot(
        p.astype(jnp.bfloat16), fd, preferred_element_type=jnp.float32)
    m_scr[...] = m_new

    @pl.when(ki == pl.num_programs(2) - 1)
    def _finalize():
        inv_l = pl.reciprocal(l_scr[...], approx=True)               # (TQ, 1)
        fe = acc_scr[...] * inv_l * alpha_ref[0]                     # (TQ, C)
        # Write channel-major so the wrapper output is a plain reshape to NCHW
        # and the store is lane-dense (last dim = TQ).
        out_ref[0] = (jnp.transpose(fe) + x_ref[0]).astype(out_ref.dtype)


# ---------------------------------------------------------------------------
# Wrapper
# ---------------------------------------------------------------------------
def _pick_tile(n, candidates=(512, 256, 128)):
    for t in candidates:
        if n % t == 0:
            return t
    return n


def _flash_vmem_bytes(tq, tk, c, c8):
    bf16, f32 = 2, 4
    dbl = 2                                    # double-buffered pipeline copies
    in_bytes = dbl * (tq * c8 * bf16 + tk * c8 * bf16 + tk * c * bf16
                      + c * tq * f32)
    out_bytes = dbl * c * tq * f32
    scratch = 2 * tq * f32 + tq * c * f32
    live_tmp = 3 * tq * tk * f32               # energy / probs / headroom
    return in_bytes + out_bytes + scratch + live_tmp


def position_attention(x_nchw, wb, wc, wd, bb, bc, bd, alpha,
                       *, tq=None, tk=None, tp=None):
    """x_nchw: (B, C, H, W) f32. 1x1-conv weights stored as (C_in, C_out)."""
    B, C, H, W = x_nchw.shape
    N = H * W
    C8 = wb.shape[1]

    tp = tp or _pick_tile(N)
    tq = tq or _pick_tile(N)
    tk = tk or _pick_tile(N)
    if (N % tp) or (N % tq) or (N % tk):
        raise ValueError(f"H*W={N} must be divisible by tiles "
                         f"(tp={tp}, tq={tq}, tk={tk})")
    # TODO(synk): pad N to a multiple of 128 (with masked softmax) to support
    # arbitrary spatial sizes; current test shapes keep the tiles exact.

    # NCHW -> (B, C, N): a free reshape, no HBM transpose.
    x_cn = x_nchw.reshape(B, C, N)

    fb, fc, fd = pl.pallas_call(
        _proj_kernel,
        out_shape=(jax.ShapeDtypeStruct((B, N, C8), jnp.bfloat16),
                   jax.ShapeDtypeStruct((B, N, C8), jnp.bfloat16),
                   jax.ShapeDtypeStruct((B, N, C), jnp.bfloat16)),
        grid_spec=pltpu.PrefetchScalarGridSpec(
            num_scalar_prefetch=0,
            grid=(B, N // tp),
            in_specs=[
                pl.BlockSpec((1, C, tp), lambda b, p: (b, 0, p)),   # x
                pl.BlockSpec((C, C8), lambda b, p: (0, 0)),         # wb
                pl.BlockSpec((C, C8), lambda b, p: (0, 0)),         # wc
                pl.BlockSpec((C, C), lambda b, p: (0, 0)),          # wd
                pl.BlockSpec((1, C8), lambda b, p: (0, 0)),         # bb
                pl.BlockSpec((1, C8), lambda b, p: (0, 0)),         # bc
                pl.BlockSpec((1, C), lambda b, p: (0, 0)),          # bd
            ],
            out_specs=[
                pl.BlockSpec((1, tp, C8), lambda b, p: (b, p, 0)),  # feat_b
                pl.BlockSpec((1, tp, C8), lambda b, p: (b, p, 0)),  # feat_c
                pl.BlockSpec((1, tp, C), lambda b, p: (b, p, 0)),   # feat_d
            ],
        ),
        compiler_params=pltpu.CompilerParams(
            dimension_semantics=("parallel", "parallel")),
    )(x_cn, wb, wc, wd, bb, bc, bd)

    vmem_limit = int(min(max(2 * _flash_vmem_bytes(tq, tk, C, C8),
                             8 * 1024 * 1024),
                         64 * 1024 * 1024))

    out_cn = pl.pallas_call(
        _pam_flash_kernel,
        out_shape=jax.ShapeDtypeStruct((B, C, N), x_nchw.dtype),
        grid_spec=pltpu.PrefetchScalarGridSpec(
            num_scalar_prefetch=0,
            grid=(B, N // tq, N // tk),
            in_specs=[
                pl.BlockSpec(memory_space=pltpu.SMEM),                  # alpha
                pl.BlockSpec((1, tq, C8), lambda b, q, k: (b, q, 0)),   # feat_b
                pl.BlockSpec((1, tk, C8), lambda b, q, k: (b, k, 0)),   # feat_c
                pl.BlockSpec((1, tk, C), lambda b, q, k: (b, k, 0)),    # feat_d
                pl.BlockSpec((1, C, tq), lambda b, q, k: (b, 0, q)),    # x (res)
            ],
            out_specs=pl.BlockSpec((1, C, tq), lambda b, q, k: (b, 0, q)),
            scratch_shapes=[
                pltpu.VMEM((tq, 1), jnp.float32),   # running max
                pltpu.VMEM((tq, 1), jnp.float32),   # running sum
                pltpu.VMEM((tq, C), jnp.float32),   # output accumulator
            ],
        ),
        compiler_params=pltpu.CompilerParams(
            dimension_semantics=("parallel", "parallel", "arbitrary"),
            vmem_limit_bytes=vmem_limit),
    )(alpha, fb, fc, fd, x_cn)

    # (B, C, N) -> NCHW: another free reshape.
    return out_cn.reshape(B, C, H, W)


def position_attention_ref(x, wb, wc, wd, bb, bc, bd, alpha):
    """Pure-JAX reference mirroring the PyTorch forward (NCHW)."""
    B, C, H, W = x.shape
    N = H * W
    xf = jnp.transpose(x, (0, 2, 3, 1)).reshape(B, N, C)               # (B, N, C)
    fb = xf @ wb + bb                                                  # (B, N, C8)
    fc = xf @ wc + bc                                                  # (B, N, C8)
    fd = xf @ wd + bd                                                  # (B, N, C)
    energy = jnp.einsum('bic,bjc->bij', fb, fc)                        # (B, N, N)
    attn = jax.nn.softmax(energy, axis=-1)
    fe = jnp.einsum('bij,bjc->bic', attn, fd)                          # (B, N, C)
    out = alpha[0] * fe + xf
    return jnp.transpose(out.reshape(B, H, W, C), (0, 3, 1, 2))


if __name__ == "__main__":
    key = jax.random.PRNGKey(0)
    B, C, H, W = 2, 32, 16, 16          # N = 256, reduced channels C8 = 4
    C8 = C // 8

    k = jax.random.split(key, 8)
    x = jax.random.normal(k[0], (B, C, H, W), dtype=jnp.float32)

    # Conv2d(C, C8, 1) weight is (C8, C, 1, 1) in PyTorch; we store (C_in, C_out).
    wb = jax.random.normal(k[1], (C, C8), dtype=jnp.float32) * 0.1
    wc = jax.random.normal(k[2], (C, C8), dtype=jnp.float32) * 0.1
    wd = jax.random.normal(k[3], (C, C), dtype=jnp.float32) * 0.1
    bb = jax.random.normal(k[4], (1, C8), dtype=jnp.float32) * 0.1
    bc = jax.random.normal(k[5], (1, C8), dtype=jnp.float32) * 0.1
    bd = jax.random.normal(k[6], (1, C), dtype=jnp.float32) * 0.1
    # nn.Parameter(torch.zeros(1)) -> trainable scalar; nonzero so the
    # attention path actually contributes in this synthetic test.
    alpha = jnp.array([0.5], dtype=jnp.float32)

    # tq = tk = 128 so the online softmax runs across 2 kv tiles per query tile.
    out = position_attention(x, wb, wc, wd, bb, bc, bd, alpha,
                             tq=128, tk=128, tp=128)
    out = jax.block_until_ready(out)

    ref = position_attention_ref(x, wb, wc, wd, bb, bc, bd, alpha)
    # bf16 MXU operands -> loosened tolerance vs the f32 reference.
    np.testing.assert_allclose(np.asarray(out), np.asarray(ref),
                               rtol=2e-2, atol=2e-2)

    print("KERNEL_OK")
</pallas_src>

<mosaic_0001>
module attributes {stable_mosaic.version = 11 : i64} {
  func.func @_proj_kernel(%arg0: i32, %arg1: i32, %arg2: memref<1x32x128xf32, #tpu.memory_space<vmem>>, %arg3: memref<32x4xf32, #tpu.memory_space<vmem>>, %arg4: memref<32x4xf32, #tpu.memory_space<vmem>>, %arg5: memref<32x32xf32, #tpu.memory_space<vmem>>, %arg6: memref<1x4xf32, #tpu.memory_space<vmem>>, %arg7: memref<1x4xf32, #tpu.memory_space<vmem>>, %arg8: memref<1x32xf32, #tpu.memory_space<vmem>>, %arg9: memref<1x128x4xbf16, #tpu.memory_space<vmem>>, %arg10: memref<1x128x4xbf16, #tpu.memory_space<vmem>>, %arg11: memref<1x128x32xbf16, #tpu.memory_space<vmem>>) attributes {dimension_semantics = [#tpu.dimension_semantics<parallel>, #tpu.dimension_semantics<parallel>], iteration_bounds = array<i64: 2, 2>, scalar_prefetch = 0 : i64, scratch_operands = 0 : i64, tpu.core_type = #tpu.core_type<tc>, window_params = [{transform_indices = @transform_0, window_bounds = array<i64: 1, 32, 128>}, {pipeline_mode = #tpu.pipeline_mode<synchronous>, transform_indices = @transform_1, window_bounds = array<i64: 32, 4>}, {pipeline_mode = #tpu.pipeline_mode<synchronous>, transform_indices = @transform_2, window_bounds = array<i64: 32, 4>}, {pipeline_mode = #tpu.pipeline_mode<synchronous>, transform_indices = @transform_3, window_bounds = array<i64: 32, 32>}, {pipeline_mode = #tpu.pipeline_mode<synchronous>, transform_indices = @transform_4, window_bounds = array<i64: 1, 4>}, {pipeline_mode = #tpu.pipeline_mode<synchronous>, transform_indices = @transform_5, window_bounds = array<i64: 1, 4>}, {pipeline_mode = #tpu.pipeline_mode<synchronous>, transform_indices = @transform_6, window_bounds = array<i64: 1, 32>}, {transform_indices = @transform_7, window_bounds = array<i64: 1, 128, 4>}, {transform_indices = @transform_8, window_bounds = array<i64: 1, 128, 4>}, {transform_indices = @transform_9, window_bounds = array<i64: 1, 128, 32>}]} {
    %c0 = arith.constant 0 : index
    %c0_0 = arith.constant 0 : index
    %c0_1 = arith.constant 0 : index
    %0 = vector.load %arg2[%c0, %c0_0, %c0_1] : memref<1x32x128xf32, #tpu.memory_space<vmem>>, vector<1x32x128xf32>
    %1 = vector.shape_cast %0 : vector<1x32x128xf32> to vector<32x128xf32>
    %2 = tpu.transpose %1, [1, 0] : vector<32x128xf32> -> vector<128x32xf32>
    %3 = arith.truncf %2 : vector<128x32xf32> to vector<128x32xbf16>
    %c0_2 = arith.constant 0 : index
    %c0_3 = arith.constant 0 : index
    %4 = vector.load %arg3[%c0_2, %c0_3] : memref<32x4xf32, #tpu.memory_space<vmem>>, vector<32x4xf32>
    %5 = arith.truncf %4 : vector<32x4xf32> to vector<32x4xbf16>
    %c0_4 = arith.constant 0 : index
    %c0_5 = arith.constant 0 : index
    %6 = vector.load %arg4[%c0_4, %c0_5] : memref<32x4xf32, #tpu.memory_space<vmem>>, vector<32x4xf32>
    %7 = arith.truncf %6 : vector<32x4xf32> to vector<32x4xbf16>
    %c0_6 = arith.constant 0 : index
    %c0_7 = arith.constant 0 : index
    %8 = vector.load %arg5[%c0_6, %c0_7] : memref<32x32xf32, #tpu.memory_space<vmem>>, vector<32x32xf32>
    %9 = arith.truncf %8 : vector<32x32xf32> to vector<32x32xbf16>
    %cst = arith.constant dense<0.000000e+00> : vector<128x4xf32>
    %10 = tpu.matmul %3, %5, %cst {dimension_numbers = #tpu.dot_dimension_numbers<[1], [0], [0], [1], [0, 0, 1, 1], [], []>} : vector<128x32xbf16>, vector<32x4xbf16>, vector<128x4xf32> -> vector<128x4xf32>
    %c0_8 = arith.constant 0 : index
    %c0_9 = arith.constant 0 : index
    %11 = vector.load %arg6[%c0_8, %c0_9] : memref<1x4xf32, #tpu.memory_space<vmem>>, vector<1x4xf32>
    %12 = vector.broadcast %11 : vector<1x4xf32> to vector<128x4xf32>
    %13 = arith.addf %10, %12 : vector<128x4xf32>
    %cst_10 = arith.constant dense<0.000000e+00> : vector<128x4xf32>
    %14 = tpu.matmul %3, %7, %cst_10 {dimension_numbers = #tpu.dot_dimension_numbers<[1], [0], [0], [1], [0, 0, 1, 1], [], []>} : vector<128x32xbf16>, vector<32x4xbf16>, vector<128x4xf32> -> vector<128x4xf32>
    %c0_11 = arith.constant 0 : index
    %c0_12 = arith.constant 0 : index
    %15 = vector.load %arg7[%c0_11, %c0_12] : memref<1x4xf32, #tpu.memory_space<vmem>>, vector<1x4xf32>
    %16 = vector.broadcast %15 : vector<1x4xf32> to vector<128x4xf32>
    %17 = arith.addf %14, %16 : vector<128x4xf32>
    %cst_13 = arith.constant dense<0.000000e+00> : vector<128x32xf32>
    %18 = tpu.matmul %3, %9, %cst_13 {dimension_numbers = #tpu.dot_dimension_numbers<[1], [0], [0], [1], [0, 0, 1, 1], [], []>} : vector<128x32xbf16>, vector<32x32xbf16>, vector<128x32xf32> -> vector<128x32xf32>
    %c0_14 = arith.constant 0 : index
    %c0_15 = arith.constant 0 : index
    %19 = vector.load %arg8[%c0_14, %c0_15] : memref<1x32xf32, #tpu.memory_space<vmem>>, vector<1x32xf32>
    %20 = vector.broadcast %19 : vector<1x32xf32> to vector<128x32xf32>
    %21 = arith.addf %18, %20 : vector<128x32xf32>
    %22 = arith.truncf %13 : vector<128x4xf32> to vector<128x4xbf16>
    %c0_16 = arith.constant 0 : index
    %c0_17 = arith.constant 0 : index
    %c0_18 = arith.constant 0 : index
    %23 = vector.load %arg9[%c0_16, %c0_17, %c0_18] : memref<1x128x4xbf16, #tpu.memory_space<vmem>>, vector<1x128x4xbf16>
    %24 = vector.shape_cast %23 : vector<1x128x4xbf16> to vector<128x4xbf16>
    %25 = vector.shape_cast %22 : vector<128x4xbf16> to vector<1x128x4xbf16>
    tpu.vector_store %arg9[%c0_16, %c0_17, %c0_18], %25 {strides = array<i32>} : memref<1x128x4xbf16, #tpu.memory_space<vmem>>, vector<1x128x4xbf16>,
    %26 = arith.truncf %17 : vector<128x4xf32> to vector<128x4xbf16>
    %c0_19 = arith.constant 0 : index
    %c0_20 = arith.constant 0 : index
    %c0_21 = arith.constant 0 : index
    %27 = vector.load %arg10[%c0_19, %c0_20, %c0_21] : memref<1x128x4xbf16, #tpu.memory_space<vmem>>, vector<1x128x4xbf16>
    %28 = vector.shape_cast %27 : vector<1x128x4xbf16> to vector<128x4xbf16>
    %29 = vector.shape_cast %26 : vector<128x4xbf16> to vector<1x128x4xbf16>
    tpu.vector_store %arg10[%c0_19, %c0_20, %c0_21], %29 {strides = array<i32>} : memref<1x128x4xbf16, #tpu.memory_space<vmem>>, vector<1x128x4xbf16>,
    %30 = arith.truncf %21 : vector<128x32xf32> to vector<128x32xbf16>
    %c0_22 = arith.constant 0 : index
    %c0_23 = arith.constant 0 : index
    %c0_24 = arith.constant 0 : index
    %31 = vector.load %arg11[%c0_22, %c0_23, %c0_24] : memref<1x128x32xbf16, #tpu.memory_space<vmem>>, vector<1x128x32xbf16>
    %32 = vector.shape_cast %31 : vector<1x128x32xbf16> to vector<128x32xbf16>
    %33 = vector.shape_cast %30 : vector<128x32xbf16> to vector<1x128x32xbf16>
    tpu.vector_store %arg11[%c0_22, %c0_23, %c0_24], %33 {strides = array<i32>} : memref<1x128x32xbf16, #tpu.memory_space<vmem>>, vector<1x128x32xbf16>,
    return
  }
  func.func @transform_0(%arg0: i32, %arg1: i32) -> (i32, i32, i32) {
    %c0_i32 = arith.constant 0 : i32
    %c0_i32_0 = arith.constant 0 : i32
    return %arg0, %c0_i32, %arg1 : i32, i32, i32
  }
  func.func @transform_1(%arg0: i32, %arg1: i32) -> (i32, i32) {
    %c0_i32 = arith.constant 0 : i32
    %c0_i32_0 = arith.constant 0 : i32
    %c0_i32_1 = arith.constant 0 : i32
    return %c0_i32, %c0_i32_0 : i32, i32
  }
  func.func @transform_2(%arg0: i32, %arg1: i32) -> (i32, i32) {
    %c0_i32 = arith.constant 0 : i32
    %c0_i32_0 = arith.constant 0 : i32
    %c0_i32_1 = arith.constant 0 : i32
    return %c0_i32, %c0_i32_0 : i32, i32
  }
  func.func @transform_3(%arg0: i32, %arg1: i32) -> (i32, i32) {
    %c0_i32 = arith.constant 0 : i32
    %c0_i32_0 = arith.constant 0 : i32
    %c0_i32_1 = arith.constant 0 : i32
    return %c0_i32, %c0_i32_0 : i32, i32
  }
  func.func @transform_4(%arg0: i32, %arg1: i32) -> (i32, i32) {
    %c0_i32 = arith.constant 0 : i32
    %c0_i32_0 = arith.constant 0 : i32
    %c0_i32_1 = arith.constant 0 : i32
    return %c0_i32, %c0_i32_0 : i32, i32
  }
  func.func @transform_5(%arg0: i32, %arg1: i32) -> (i32, i32) {
    %c0_i32 = arith.constant 0 : i32
    %c0_i32_0 = arith.constant 0 : i32
    %c0_i32_1 = arith.constant 0 : i32
    return %c0_i32, %c0_i32_0 : i32, i32
  }
  func.func @transform_6(%arg0: i32, %arg1: i32) -> (i32, i32) {
    %c0_i32 = arith.constant 0 : i32
    %c0_i32_0 = arith.constant 0 : i32
    %c0_i32_1 = arith.constant 0 : i32
    return %c0_i32, %c0_i32_0 : i32, i32
  }
  func.func @transform_7(%arg0: i32, %arg1: i32) -> (i32, i32, i32) {
    %c0_i32 = arith.constant 0 : i32
    %c0_i32_0 = arith.constant 0 : i32
    return %arg0, %arg1, %c0_i32 : i32, i32, i32
  }
  func.func @transform_8(%arg0: i32, %arg1: i32) -> (i32, i32, i32) {
    %c0_i32 = arith.constant 0 : i32
    %c0_i32_0 = arith.constant 0 : i32
    return %arg0, %arg1, %c0_i32 : i32, i32, i32
  }
  func.func @transform_9(%arg0: i32, %arg1: i32) -> (i32, i32, i32) {
    %c0_i32 = arith.constant 0 : i32
    %c0_i32_0 = arith.constant 0 : i32
    return %arg0, %arg1, %c0_i32 : i32, i32, i32
  }
}

</mosaic_0001>

<llo_original>
// kernel: tpu_custom_call.1
$region0: #{tpu_custom_call.1}
  #allocation0 [shape = 'u32[]', space=smem, size = 0x4, offset = 0x4, fixed_abs, tag = 'smem constant byte address 0x4 - core index']
  #allocation1 [shape = 'u32[144,128]{1,0:T(1,128)}', space=vmem, size = 0x12000, scoped, tag = 'internal scratch']
  %s0 = inlined_call_operand.hbm [shape: f32[2,32,256], index: 0, kind: input, shape index: {}]
  %s1 = inlined_call_operand.vmem [shape: f32[32,4], index: 1, kind: input, shape index: {}]
  %s2 = inlined_call_operand.vmem [shape: f32[32,4], index: 2, kind: input, shape index: {}]
  %s3 = inlined_call_operand.vmem [shape: f32[32,32], index: 3, kind: input, shape index: {}]
  %s4 = inlined_call_operand.vmem [shape: f32[1,4], index: 4, kind: input, shape index: {}]
  %s5 = inlined_call_operand.vmem [shape: f32[1,4], index: 5, kind: input, shape index: {}]
  %s6 = inlined_call_operand.vmem [shape: f32[1,32], index: 6, kind: input, shape index: {}]
  %s7 = inlined_call_operand.vmem [shape: bf16[2,256,4], index: 7, kind: output, shape index: {0}]
  %s8 = inlined_call_operand.vmem [shape: bf16[2,256,4], index: 8, kind: output, shape index: {1}]
  %s9 = inlined_call_operand.vmem [shape: bf16[2,256,32], index: 9, kind: output, shape index: {2}]
  %10 = xla_tuple %s7, %s8, %s9
  %s11 = sld [smem:[#allocation0]]
  $region81: #{tpu_custom_call.1} parent=0
    _
  %s13 = ssub.s32 1, %s11
  %s14 = scalar_select 0, %s13, %s11
  $region1: #{tpu_custom_call.1} parent=0
    #allocation2 [shape = 'u8[32768]{0}', space=vmem, size = 0x8000, scoped, tag = 'input window, operand 0']
    #allocation3 [shape = 's32[2]{0}', space=sflag, size = 0x8, scoped, tag = 'scoped memory for tpu_custom_call.1']
    %15 = vsyncpa [#allocation3], 0
    %s16 = scalar_lea.sflag [#allocation3], 1
    %17 = vsyncpa %s16, 0
    loop: start=0, step=1, limit=6
    $region2: #{tpu_custom_call.1} parent=1 // loop_pre_header
      _
    $region3: #{tpu_custom_call.1} parent=1 // loop_header
      %s19 = sphi 0, %s23
      %p20 = scmp.ge.s32.totalorder %s19, 6
      %s26 = sphi 0, %s38
      %s27 = sphi 0, %s34
      %s28 = sphi 0, %s26
      %s29 = sphi 0, %s27
      %s30 = sphi 0, %s28
      %s31 = sphi 0, %s29
      %s43 = sphi 0, %s45
      %s46 = sphi 0, %s43
      %s47 = sphi 0, %s46
      %s63 = sphi 0, %s47
      %s67 = sphi 0, %s67
      %s69 = sphi 0, %s67
      %s70 = sphi 0, %s69
      %s84 = sphi 0, %s70
      %s88 = sphi 0, %s88
      %s90 = sphi 0, %s88
      %s91 = sphi 0, %s90
      %s105 = sphi 0, %s91
      %s109 = sphi 0, %s109
      %s111 = sphi 0, %s109
      %s112 = sphi 0, %s111
      %s126 = sphi 0, %s112
      %s130 = sphi 0, %s130
      %s132 = sphi 0, %s130
      %s133 = sphi 0, %s132
      %s147 = sphi 0, %s133
      %s151 = sphi 0, %s151
      %s153 = sphi 0, %s151
      %s154 = sphi 0, %s153
      %s168 = sphi 0, %s154
      %s172 = sphi 0, %s172
      %s174 = sphi 0, %s172
      %s175 = sphi 0, %s174
      %s189 = sphi 0, %s175
      %s197 = sphi 0, %s199
      %s200 = sphi 0, %s197
      %s201 = sphi 0, %s200
      %s217 = sphi 0, %s201
      %s225 = sphi 0, %s227
      %s228 = sphi 0, %s225
      %s229 = sphi 0, %s228
      %s245 = sphi 0, %s229
      %s253 = sphi 0, %s255
      %s256 = sphi 0, %s253
      %s257 = sphi 0, %s256
      %s273 = sphi 0, %s257
    $region4: #{tpu_custom_call.1} parent=1 // loop_header_branch
      %22 = sbr.rel (%p20) target = $region8
    $region5: #{tpu_custom_call.1} parent=1 // loop_body
      %s24 = ssub.s32 %s19, 1
      %s25 = ssub.s32 %s19, 2
      %s32 = sadd.s32 1, %s27
      %p33 = scmp.ge.s32.totalorder %s32, 2
      %s34 = scalar_select %p33, 0, %s32
      %s35 = sadd.s32 1, %s26
      %s36 = scalar_select %p33, %s35, %s26
      %p37 = scmp.ge.s32.totalorder %s36, 2
      %s38 = scalar_select %p37, 0, %s36
      %s39 = ssub.s32 %s26, %s38
      %s40 = ssub.s32 %s27, %s34
      %s41 = sor.u32 %s39, %s40
      %p42 = scmp.eq.s32.totalorder %s41, 0
      %s44 = sadd.s32 %s43, 1
      %s45 = scalar_select %p42, %s43, %s44
      %p48 = pneg %p42
      %p49 = scmp.eq.s32.totalorder %s19, 3
      %p50 = por %p48, %p49
      %p51 = scmp.ne.s32.totalorder %s43, %s46
      %p52 = scmp.eq.s32.totalorder %s19, 0
      %p53 = por %p51, %p52
      %p54 = scmp.ne.s32.totalorder %s43, %s46
      %p55 = scmp.eq.s32.totalorder %s24, 3
      %p56 = por %p54, %p55
      %p57 = scmp.ne.s32.totalorder %s46, %s47
      %p58 = scmp.eq.s32.totalorder %s24, 0
      %p59 = por %p57, %p58
      %p60 = scmp.ne.s32.totalorder %s46, %s47
      %p61 = scmp.eq.s32.totalorder %s25, 3
      %p62 = por %p60, %p61
      %p64 = scmp.ne.s32.totalorder %s47, %s63
      %p65 = scmp.eq.s32.totalorder %s25, 0
      %p66 = por %p64, %p65
      %s68 = sadd.s32 %s67, 1
      %p71 = scmp.eq.s32.totalorder %s19, 3
      %p72 = scmp.ne.s32.totalorder %s67, %s69
      %p73 = scmp.eq.s32.totalorder %s19, 0
      %p74 = por %p72, %p73
      %p75 = scmp.ne.s32.totalorder %s67, %s69
      %p76 = scmp.eq.s32.totalorder %s24, 3
      %p77 = por %p75, %p76
      %p78 = scmp.ne.s32.totalorder %s69, %s70
      %p79 = scmp.eq.s32.totalorder %s24, 0
      %p80 = por %p78, %p79
      %p81 = scmp.ne.s32.totalorder %s69, %s70
      %p82 = scmp.eq.s32.totalorder %s25, 3
      %p83 = por %p81, %p82
      %p85 = scmp.ne.s32.totalorder %s70, %s84
      %p86 = scmp.eq.s32.totalorder %s25, 0
      %p87 = por %p85, %p86
      %s89 = sadd.s32 %s88, 1
      %p92 = scmp.eq.s32.totalorder %s19, 3
      %p93 = scmp.ne.s32.totalorder %s88, %s90
      %p94 = scmp.eq.s32.totalorder %s19, 0
      %p95 = por %p93, %p94
      %p96 = scmp.ne.s32.totalorder %s88, %s90
      %p97 = scmp.eq.s32.totalorder %s24, 3
      %p98 = por %p96, %p97
      %p99 = scmp.ne.s32.totalorder %s90, %s91
      %p100 = scmp.eq.s32.totalorder %s24, 0
      %p101 = por %p99, %p100
      %p102 = scmp.ne.s32.totalorder %s90, %s91
      %p103 = scmp.eq.s32.totalorder %s25, 3
      %p104 = por %p102, %p103
      %p106 = scmp.ne.s32.totalorder %s91, %s105
      %p107 = scmp.eq.s32.totalorder %s25, 0
      %p108 = por %p106, %p107
      %s110 = sadd.s32 %s109, 1
      %p113 = scmp.eq.s32.totalorder %s19, 3
      %p114 = scmp.ne.s32.totalorder %s109, %s111
      %p115 = scmp.eq.s32.totalorder %s19, 0
      %p116 = por %p114, %p115
      %p117 = scmp.ne.s32.totalorder %s109, %s111
      %p118 = scmp.eq.s32.totalorder %s24, 3
      %p119 = por %p117, %p118
      %p120 = scmp.ne.s32.totalorder %s111, %s112
      %p121 = scmp.eq.s32.totalorder %s24, 0
      %p122 = por %p120, %p121
      %p123 = scmp.ne.s32.totalorder %s111, %s112
      %p124 = scmp.eq.s32.totalorder %s25, 3
      %p125 = por %p123, %p124
      %p127 = scmp.ne.s32.totalorder %s112, %s126
      %p128 = scmp.eq.s32.totalorder %s25, 0
      %p129 = por %p127, %p128
      %s131 = sadd.s32 %s130, 1
      %p134 = scmp.eq.s32.totalorder %s19, 3
      %p135 = scmp.ne.s32.totalorder %s130, %s132
      %p136 = scmp.eq.s32.totalorder %s19, 0
      %p137 = por %p135, %p136
      %p138 = scmp.ne.s32.totalorder %s130, %s132
      %p139 = scmp.eq.s32.totalorder %s24, 3
      %p140 = por %p138, %p139
      %p141 = scmp.ne.s32.totalorder %s132, %s133
      %p142 = scmp.eq.s32.totalorder %s24, 0
      %p143 = por %p141, %p142
      %p144 = scmp.ne.s32.totalorder %s132, %s133
      %p145 = scmp.eq.s32.totalorder %s25, 3
      %p146 = por %p144, %p145
      %p148 = scmp.ne.s32.totalorder %s133, %s147
      %p149 = scmp.eq.s32.totalorder %s25, 0
      %p150 = por %p148, %p149
      %s152 = sadd.s32 %s151, 1
      %p155 = scmp.eq.s32.totalorder %s19, 3
      %p156 = scmp.ne.s32.totalorder %s151, %s153
      %p157 = scmp.eq.s32.totalorder %s19, 0
      %p158 = por %p156, %p157
      %p159 = scmp.ne.s32.totalorder %s151, %s153
      %p160 = scmp.eq.s32.totalorder %s24, 3
      %p161 = por %p159, %p160
      %p162 = scmp.ne.s32.totalorder %s153, %s154
      %p163 = scmp.eq.s32.totalorder %s24, 0
      %p164 = por %p162, %p163
      %p165 = scmp.ne.s32.totalorder %s153, %s154
      %p166 = scmp.eq.s32.totalorder %s25, 3
      %p167 = por %p165, %p166
      %p169 = scmp.ne.s32.totalorder %s154, %s168
      %p170 = scmp.eq.s32.totalorder %s25, 0
      %p171 = por %p169, %p170
      %s173 = sadd.s32 %s172, 1
      %p176 = scmp.eq.s32.totalorder %s19, 3
      %p177 = scmp.ne.s32.totalorder %s172, %s174
      %p178 = scmp.eq.s32.totalorder %s19, 0
      %p179 = por %p177, %p178
      %p180 = scmp.ne.s32.totalorder %s172, %s174
      %p181 = scmp.eq.s32.totalorder %s24, 3
      %p182 = por %p180, %p181
      %p183 = scmp.ne.s32.totalorder %s174, %s175
      %p184 = scmp.eq.s32.totalorder %s24, 0
      %p185 = por %p183, %p184
      %p186 = scmp.ne.s32.totalorder %s174, %s175
      %p187 = scmp.eq.s32.totalorder %s25, 3
      %p188 = por %p186, %p187
      %p190 = scmp.ne.s32.totalorder %s175, %s189
      %p191 = scmp.eq.s32.totalorder %s25, 0
      %p192 = por %p190, %p191
      %s193 = ssub.s32 %s26, %s38
      %s194 = ssub.s32 %s27, %s34
      %s195 = sor.u32 %s193, %s194
      %p196 = scmp.eq.s32.totalorder %s195, 0
      %s198 = sadd.s32 %s197, 1
      %s199 = scalar_select %p196, %s197, %s198
      %p202 = pneg %p196
      %p203 = scmp.eq.s32.totalorder %s19, 3
      %p204 = por %p202, %p203
      %p205 = scmp.ne.s32.totalorder %s197, %s200
      %p206 = scmp.eq.s32.totalorder %s19, 0
      %p207 = por %p205, %p206
      %p208 = scmp.ne.s32.totalorder %s197, %s200
      %p209 = scmp.eq.s32.totalorder %s24, 3
      %p210 = por %p208, %p209
      %p211 = scmp.ne.s32.totalorder %s200, %s201
      %p212 = scmp.eq.s32.totalorder %s24, 0
      %p213 = por %p211, %p212
      %p214 = scmp.ne.s32.totalorder %s200, %s201
      %p215 = scmp.eq.s32.totalorder %s25, 3
      %p216 = por %p214, %p215
      %p218 = scmp.ne.s32.totalorder %s201, %s217
      %p219 = scmp.eq.s32.totalorder %s25, 0
      %p220 = por %p218, %p219
      %s221 = ssub.s32 %s26, %s38
      %s222 = ssub.s32 %s27, %s34
      %s223 = sor.u32 %s221, %s222
      %p224 = scmp.eq.s32.totalorder %s223, 0
      %s226 = sadd.s32 %s225, 1
      %s227 = scalar_select %p224, %s225, %s226
      %p230 = pneg %p224
      %p231 = scmp.eq.s32.totalorder %s19, 3
      %p232 = por %p230, %p231
      %p233 = scmp.ne.s32.totalorder %s225, %s228
      %p234 = scmp.eq.s32.totalorder %s19, 0
      %p235 = por %p233, %p234
      %p236 = scmp.ne.s32.totalorder %s225, %s228
      %p237 = scmp.eq.s32.totalorder %s24, 3
      %p238 = por %p236, %p237
      %p239 = scmp.ne.s32.totalorder %s228, %s229
      %p240 = scmp.eq.s32.totalorder %s24, 0
      %p241 = por %p239, %p240
      %p242 = scmp.ne.s32.totalorder %s228, %s229
      %p243 = scmp.eq.s32.totalorder %s25, 3
      %p244 = por %p242, %p243
      %p246 = scmp.ne.s32.totalorder %s229, %s245
      %p247 = scmp.eq.s32.totalorder %s25, 0
      %p248 = por %p246, %p247
      %s249 = ssub.s32 %s26, %s38
      %s250 = ssub.s32 %s27, %s34
      %s251 = sor.u32 %s249, %s250
      %p252 = scmp.eq.s32.totalorder %s251, 0
      %s254 = sadd.s32 %s253, 1
      %s255 = scalar_select %p252, %s253, %s254
      %p258 = pneg %p252
      %p259 = scmp.eq.s32.totalorder %s19, 3
      %p260 = por %p258, %p259
      %p261 = scmp.ne.s32.totalorder %s253, %s256
      %p262 = scmp.eq.s32.totalorder %s19, 0
      %p263 = por %p261, %p262
      %p264 = scmp.ne.s32.totalorder %s253, %s256
      %p265 = scmp.eq.s32.totalorder %s24, 3
      %p266 = por %p264, %p265
      %p267 = scmp.ne.s32.totalorder %s256, %s257
      %p268 = scmp.eq.s32.totalorder %s24, 0
      %p269 = por %p267, %p268
      %p270 = scmp.ne.s32.totalorder %s256, %s257
      %p271 = scmp.eq.s32.totalorder %s25, 3
      %p272 = por %p270, %p271
      %p274 = scmp.ne.s32.totalorder %s257, %s273
      %p275 = scmp.eq.s32.totalorder %s25, 0
      %p276 = por %p274, %p275
      %p277 = scmp.le.s32.totalorder 1, %s19
      %p278 = scmp.lt.s32.totalorder %s19, 5
      %p279 = pnand %p277, %p278
      %p280 = pneg %p279
      // Predicated region
      $region9: #{tpu_custom_call.1} parent=5 // pred_check
        _
      $region10: #{tpu_custom_call.1} parent=5 // pred_check_branch
        %282 = sbr.rel (%p279) target = $region12
      $region11: #{tpu_custom_call.1} parent=5 // pred_region
        %s283 = ssub.s32 %s19, 1
        // Predicated region
        $region13: #{tpu_custom_call.1} parent=11 // pred_check
          %p284 = pneg %p80
        $region14: #{tpu_custom_call.1} parent=11 // pred_check_branch
          %286 = sbr.rel (%p284) target = $region16
        $region15: #{tpu_custom_call.1} parent=11 // pred_region
          _
        $region16: #{tpu_custom_call.1} parent=11 // pred_fallthru
          _
        // Predicated region
        $region17: #{tpu_custom_call.1} parent=11 // pred_check
          %p287 = pneg %p101
        $region18: #{tpu_custom_call.1} parent=11 // pred_check_branch
          %289 = sbr.rel (%p287) target = $region20
        $region19: #{tpu_custom_call.1} parent=11 // pred_region
          _
        $region20: #{tpu_custom_call.1} parent=11 // pred_fallthru
          _
        // Predicated region
        $region21: #{tpu_custom_call.1} parent=11 // pred_check
          %p290 = pneg %p122
        $region22: #{tpu_custom_call.1} parent=11 // pred_check_branch
          %292 = sbr.rel (%p290) target = $region24
        $region23: #{tpu_custom_call.1} parent=11 // pred_region
          _
        $region24: #{tpu_custom_call.1} parent=11 // pred_fallthru
          _
        // Predicated region
        $region25: #{tpu_custom_call.1} parent=11 // pred_check
          %p293 = pneg %p143
        $region26: #{tpu_custom_call.1} parent=11 // pred_check_branch
          %295 = sbr.rel (%p293) target = $region28
        $region27: #{tpu_custom_call.1} parent=11 // pred_region
          _
        $region28: #{tpu_custom_call.1} parent=11 // pred_fallthru
          _
        // Predicated region
        $region29: #{tpu_custom_call.1} parent=11 // pred_check
          %p296 = pneg %p164
        $region30: #{tpu_custom_call.1} parent=11 // pred_check_branch
          %298 = sbr.rel (%p296) target = $region32
        $region31: #{tpu_custom_call.1} parent=11 // pred_region
          _
        $region32: #{tpu_custom_call.1} parent=11 // pred_fallthru
          _
        // Predicated region
        $region33: #{tpu_custom_call.1} parent=11 // pred_check
          %p299 = pneg %p185
        $region34: #{tpu_custom_call.1} parent=11 // pred_check_branch
          %301 = sbr.rel (%p299) target = $region36
        $region35: #{tpu_custom_call.1} parent=11 // pred_region
          _
        $region36: #{tpu_custom_call.1} parent=11 // pred_fallthru
          _
      $region12: #{tpu_custom_call.1} parent=5 // pred_fallthru
        _
      %p302 = scmp.lt.s32.totalorder %s19, 4
      // Predicated region
      $region37: #{tpu_custom_call.1} parent=5 // pred_check
        %p303 = pneg %p302
      $region38: #{tpu_custom_call.1} parent=5 // pred_check_branch
        %305 = sbr.rel (%p303) target = $region40
      $region39: #{tpu_custom_call.1} parent=5 // pred_region
        // Predicated region
        $region41: #{tpu_custom_call.1} parent=39 // pred_check
          %p306 = pneg %p53
        $region42: #{tpu_custom_call.1} parent=39 // pred_check_branch
          %308 = sbr.rel (%p306) target = $region44
        $region43: #{tpu_custom_call.1} parent=39 // pred_region
          %s309 = sand.u32 %s43, 1
          %s310 = scalar_lea.sflag [#allocation3], %s309
          %s311 = sand.u32 %s43, 1
          %s312 = smul.addr %s311, 32
          %s313 = scalar_lea.vmem [#allocation2], %s312
          %s315 = ssub.s32 512, 512
          %316 = vsyncadd %s310, %s315
          %s317 = smul.addr %s26, 8
          %s318 = sadd.s32 %s27, %s317
          %s319 = smul.addr %s318, 128
          %s320 = scalar_lea.hbm %s0, %s319
          %s321 = sshll.u32 %s313, 4
          %s322 = int_to_ptr.vmem [resolvable:$true] %s321
          %327 = dma.hbm_to_vmem [thread:$0]  %s320, 512, %s322, %s310, 256, 128, 8
        $region44: #{tpu_custom_call.1} parent=39 // pred_fallthru
          _
      $region40: #{tpu_custom_call.1} parent=5 // pred_fallthru
        _
      %p328 = scmp.le.s32.totalorder 1, %s19
      %p329 = scmp.lt.s32.totalorder %s19, 5
      %p330 = pnand %p328, %p329
      %p331 = pneg %p330
      // Predicated region
      $region45: #{tpu_custom_call.1} parent=5 // pred_check
        _
      $region46: #{tpu_custom_call.1} parent=5 // pred_check_branch
        %333 = sbr.rel (%p330) target = $region48
      $region47: #{tpu_custom_call.1} parent=5 // pred_region
        %s334 = ssub.s32 %s19, 1
        %s335 = sand.u32 %s46, 1
        %s336 = scalar_lea.sflag [#allocation3], %s335
        %s337 = sand.u32 %s46, 1
        %s338 = smul.addr %s337, 32
        %s339 = scalar_lea.vmem [#allocation2], %s338
        // Predicated region
        $region49: #{tpu_custom_call.1} parent=47 // pred_check
          %p340 = pneg %p59
        $region50: #{tpu_custom_call.1} parent=47 // pred_check_branch
          %342 = sbr.rel (%p340) target = $region52
        $region51: #{tpu_custom_call.1} parent=47 // pred_region
          %343 = dma.done %s336, 512
        $region52: #{tpu_custom_call.1} parent=47 // pred_fallthru
          _
        %s344 = sand.u32 %s46, 1
        %s345 = scalar_lea.sflag [#allocation3], %s344
        %s346 = sand.u32 %s46, 1
        %s347 = smul.addr %s346, 32
        %s348 = scalar_lea.vmem [#allocation2], %s347
        %p349 = pneg %p59
        %p350 = pneg %p56
        %p351 = pneg %p80
        %p352 = pneg %p77
        %p353 = pneg %p101
        %p354 = pneg %p98
        %p355 = pneg %p122
        %p356 = pneg %p119
        %p357 = pneg %p143
        %p358 = pneg %p140
        %p359 = pneg %p164
        %p360 = pneg %p161
        %p361 = pneg %p185
        %p362 = pneg %p182
        %p363 = pneg %p213
        %p364 = pneg %p210
        %s365 = smul.u32 16, %s29
        %p366 = scmp.lt.s32.totalorder %s28, 1
        %s367 = scalar_select %p366, %s28, 1
        %p368 = scmp.lt.s32.totalorder %s365, 31
        %s369 = scalar_select %p368, %s365, 31
        %s370 = smul.addr %s367, 32
        %s371 = sadd.s32 %s369, %s370
        %s372 = smul.addr %s371, 4
        %s373 = scalar_lea.vmem %s7, %s372
        %p374 = pneg %p241
        %p375 = pneg %p238
        %s376 = smul.u32 16, %s29
        %p377 = scmp.lt.s32.totalorder %s28, 1
        %s378 = scalar_select %p377, %s28, 1
        %p379 = scmp.lt.s32.totalorder %s376, 31
        %s380 = scalar_select %p379, %s376, 31
        %s381 = smul.addr %s378, 32
        %s382 = sadd.s32 %s380, %s381
        %s383 = smul.addr %s382, 4
        %s384 = scalar_lea.vmem %s8, %s383
        %p385 = pneg %p269
        %p386 = pneg %p266
        %s387 = smul.u32 16, %s29
        %p388 = scmp.lt.s32.totalorder %s28, 1
        %s389 = scalar_select %p388, %s28, 1
        %p390 = scmp.lt.s32.totalorder %s387, 31
        %s391 = scalar_select %p390, %s387, 31
        %s392 = smul.addr %s389, 32
        %s393 = sadd.s32 %s391, %s392
        %s394 = smul.addr %s393, 4
        %s395 = scalar_lea.vmem %s9, %s394
        %s396 = smul.u32 16, %s29
        %p397 = scmp.lt.s32.totalorder %s28, 1
        %s398 = scalar_select %p397, %s28, 1
        %p399 = scmp.lt.s32.totalorder %s396, 31
        %s400 = scalar_select %p399, %s396, 31
        %s401 = smul.addr %s398, 32
        %s402 = sadd.s32 %s400, %s401
        %s403 = smul.addr %s402, 4
        %s404 = scalar_lea.vmem %s7, %s403
        %s405 = smul.u32 16, %s29
        %s406 = smul.u32 16, %s29
        %p407 = scmp.lt.s32.totalorder %s28, 1
        %s408 = scalar_select %p407, %s28, 1
        %p409 = scmp.lt.s32.totalorder %s406, 31
        %s410 = scalar_select %p409, %s406, 31
        %s411 = smul.addr %s408, 32
        %s412 = sadd.s32 %s410, %s411
        %s413 = smul.addr %s412, 4
        %s414 = scalar_lea.vmem %s8, %s413
        %s415 = smul.u32 16, %s29
        %s416 = smul.u32 16, %s29
        %p417 = scmp.lt.s32.totalorder %s28, 1
        %s418 = scalar_select %p417, %s28, 1
        %p419 = scmp.lt.s32.totalorder %s416, 31
        %s420 = scalar_select %p419, %s416, 31
        %s421 = smul.addr %s418, 32
        %s422 = sadd.s32 %s420, %s421
        %s423 = smul.addr %s422, 4
        %s424 = scalar_lea.vmem %s9, %s423
        %s425 = smul.u32 16, %s29
        %v427 = vld [vmem:[%s339] sm:$0xff]
        %v428 = vld [vmem:[%s339 + $0x8] sm:$0xff]
        %v429 = vld [vmem:[%s339 + $0x10] sm:$0xff]
        %v430 = vld [vmem:[%s339 + $0x18] sm:$0xff]
        %431 = vxpose.xlu0.b32.start [1/16] %v427, 128
        %432 = vxpose.xlu0.b32.cont [2/16] %v428, 128
        %433 = vxpose.xlu0.b32.cont [3/16] %v429, 128
        %434 = vxpose.xlu0.b32.cont [4/16] %v430, 128
        %435 = vxpose.xlu0.b32.cont [5/16] 0.0, 128
        %436 = vxpose.xlu0.b32.cont [6/16] 0.0, 128
        %437 = vxpose.xlu0.b32.cont [7/16] 0.0, 128
        %438 = vxpose.xlu0.b32.cont [8/16] 0.0, 128
        %439 = vxpose.xlu0.b32.cont [9/16] 0.0, 128
        %440 = vxpose.xlu0.b32.cont [10/16] 0.0, 128
        %441 = vxpose.xlu0.b32.cont [11/16] 0.0, 128
        %442 = vxpose.xlu0.b32.cont [12/16] 0.0, 128
        %443 = vxpose.xlu0.b32.cont [13/16] 0.0, 128
        %444 = vxpose.xlu0.b32.cont [14/16] 0.0, 128
        %445 = vxpose.xlu0.b32.cont [15/16] 0.0, 128
        %446 = vxpose.xlu0.b32.end [16/16] 0.0, 128
        %v447 = vpop.trf.xlu0
        %v448 = vpop.trf.xlu0
        %v449 = vpop.trf.xlu0
        %v450 = vpop.trf.xlu0
        %v451 = vpop.trf.xlu0
        %v452 = vpop.trf.xlu0
        %v453 = vpop.trf.xlu0
        %v454 = vpop.trf.xlu0
        %v455 = vpop.trf.xlu0
        %v456 = vpop.trf.xlu0
        %v457 = vpop.trf.xlu0
        %v458 = vpop.trf.xlu0
        %v459 = vpop.trf.xlu0
        %v460 = vpop.trf.xlu0
        %v461 = vpop.trf.xlu0
        %v462 = vpop.trf.xlu0
        %v463 = vpack.c.bf16 %v448, %v447
        %v464 = vpack.c.bf16 %v450, %v449
        %v465 = vpack.c.bf16 %v452, %v451
        %v466 = vpack.c.bf16 %v454, %v453
        %v467 = vpack.c.bf16 %v456, %v455
        %v468 = vpack.c.bf16 %v458, %v457
        %v469 = vpack.c.bf16 %v460, %v459
        %v470 = vpack.c.bf16 %v462, %v461
        %v471 = vld [vmem:[%s1] sm:$0xff]
        %v472 = vld [vmem:[%s1 + $0x8] sm:$0xff]
        %v473 = vld [vmem:[%s1 + $0x10] sm:$0xff]
        %v474 = vld [vmem:[%s1 + $0x18] sm:$0xff]
        %v475 = vpack.c.bf16 %v472, %v471
        %v476 = vpack.c.bf16 %v474, %v473
        %v477 = vld [vmem:[%s2] sm:$0xff]
        %v478 = vld [vmem:[%s2 + $0x8] sm:$0xff]
        %v479 = vld [vmem:[%s2 + $0x10] sm:$0xff]
        %v480 = vld [vmem:[%s2 + $0x18] sm:$0xff]
        %v481 = vpack.c.bf16 %v478, %v477
        %v482 = vpack.c.bf16 %v480, %v479
        %v483 = vld [vmem:[%s3] sm:$0xff]
        %v484 = vld [vmem:[%s3 + $0x8] sm:$0xff]
        %v485 = vld [vmem:[%s3 + $0x10] sm:$0xff]
        %v486 = vld [vmem:[%s3 + $0x18] sm:$0xff]
        %v487 = vpack.c.bf16 %v484, %v483
        %v488 = vpack.c.bf16 %v486, %v485
        %v489 = vld [vmem:[%s4] sm:$0x1]
        %v491 = vlaneseq
        %v492 = vshrl.u32 %v491, 7
        %v493 = vsub.s32 0, %v492
        %v494 = vrot.slane %v489, %v493
        %vm496 = vcmask 261120
        %v498 = vsel %vm496, %v463, 0
        %v501 = vsel %vm496, %v464, 0
        %v504 = vsel %vm496, %v465, 0
        %v507 = vsel %vm496, %v466, 0
        %v510 = vsel %vm496, %v467, 0
        %v513 = vsel %vm496, %v468, 0
        %v516 = vsel %vm496, %v469, 0
        %v519 = vsel %vm496, %v470, 0
        %521 = vmatprep.subr.bf16.mxu0 0
        %522 = vmatpush1.bf16.msra.mxu0 %v475
        %523 = vmatprep.subr.bf16.mxu0 0
        %524 = vmatpush1.bf16.msra.mxu0 %v476
        %525 = vmatprep.subr.bf16.mxu0 0
        %526 = vmatpush1.bf16.msra.mxu0 0
        %527 = vmatprep.subr.bf16.mxu0 0
        %528 = vmatpush1.bf16.msra.mxu0 0
        %529 = vmatprep.subr.bf16.mxu0 0
        %530 = vmatpush1.bf16.msra.mxu0 0
        %531 = vmatprep.subr.bf16.mxu0 0
        %532 = vmatpush1.bf16.msra.mxu0 0
        %533 = vmatprep.subr.bf16.mxu0 0
        %534 = vmatpush1.bf16.msra.mxu0 0
        %535 = vmatprep.subr.bf16.mxu0 0
        %536 = vmatpush1.bf16.msra.mxu0 0
        %537 = vmatprep.subr.bf16.mxu0 0
        %538 = vmatpush1.bf16.msra.mxu0 0
        %539 = vmatprep.subr.bf16.mxu0 0
        %540 = vmatpush1.bf16.msra.mxu0 0
        %541 = vmatprep.subr.bf16.mxu0 0
        %542 = vmatpush1.bf16.msra.mxu0 0
        %543 = vmatprep.subr.bf16.mxu0 0
        %544 = vmatpush1.bf16.msra.mxu0 0
        %545 = vmatprep.subr.bf16.mxu0 0
        %546 = vmatpush1.bf16.msra.mxu0 0
        %547 = vmatprep.subr.bf16.mxu0 0
        %548 = vmatpush1.bf16.msra.mxu0 0
        %549 = vmatprep.subr.bf16.mxu0 0
        %550 = vmatpush1.bf16.msra.mxu0 0
        %551 = vmatprep.subr.bf16.mxu0 0
        %552 = vmatpush1.bf16.msra.mxu0 0
        %553 = vmatprep.mubr.bf16.mxu0 0
        %554 = vmatmul.mubr.bf16.gmra.mrb[0].mxu0 %v498
        %v555 = vpop.f32.mrb[0].mxu0
        %v556 = vadd.f32 %v494, %v555
        %v557 = vpop.f32.mrb[0].mxu0
        %v558 = vpop.f32.mrb[0].mxu0
        %v559 = vadd.f32 %v494, %v558
        %v560 = vpop.f32.mrb[0].mxu0
        %561 = vmatprep.mubr.bf16.mxu0 0
        %562 = vmatmul.mubr.bf16.gmra.mrb[0].mxu0 %v501
        %v563 = vpop.f32.mrb[0].mxu0
        %v564 = vadd.f32 %v494, %v563
        %v565 = vpop.f32.mrb[0].mxu0
        %v566 = vpop.f32.mrb[0].mxu0
        %v567 = vadd.f32 %v494, %v566
        %v568 = vpop.f32.mrb[0].mxu0
        %569 = vmatprep.mubr.bf16.mxu0 0
        %570 = vmatmul.mubr.bf16.gmra.mrb[0].mxu0 %v504
        %v571 = vpop.f32.mrb[0].mxu0
        %v572 = vadd.f32 %v494, %v571
        %v573 = vpop.f32.mrb[0].mxu0
        %v574 = vpop.f32.mrb[0].mxu0
        %v575 = vadd.f32 %v494, %v574
        %v576 = vpop.f32.mrb[0].mxu0
        %577 = vmatprep.mubr.bf16.mxu0 0
        %578 = vmatmul.mubr.bf16.gmra.mrb[0].mxu0 %v507
        %v579 = vpop.f32.mrb[0].mxu0
        %v580 = vadd.f32 %v494, %v579
        %v581 = vpop.f32.mrb[0].mxu0
        %v582 = vpop.f32.mrb[0].mxu0
        %v583 = vadd.f32 %v494, %v582
        %v584 = vpop.f32.mrb[0].mxu0
        %585 = vmatprep.mubr.bf16.mxu0 0
        %586 = vmatmul.mubr.bf16.gmra.mrb[0].mxu0 %v510
        %v587 = vpop.f32.mrb[0].mxu0
        %v588 = vadd.f32 %v494, %v587
        %v589 = vpop.f32.mrb[0].mxu0
        %v590 = vpop.f32.mrb[0].mxu0
        %v591 = vadd.f32 %v494, %v590
        %v592 = vpop.f32.mrb[0].mxu0
        %593 = vmatprep.mubr.bf16.mxu0 0
        %594 = vmatmul.mubr.bf16.gmra.mrb[0].mxu0 %v513
        %v595 = vpop.f32.mrb[0].mxu0
        %v596 = vadd.f32 %v494, %v595
        %v597 = vpop.f32.mrb[0].mxu0
        %v598 = vpop.f32.mrb[0].mxu0
        %v599 = vadd.f32 %v494, %v598
        %v600 = vpop.f32.mrb[0].mxu0
        %601 = vmatprep.mubr.bf16.mxu0 0
        %602 = vmatmul.mubr.bf16.gmra.mrb[0].mxu0 %v516
        %v603 = vpop.f32.mrb[0].mxu0
        %v604 = vadd.f32 %v494, %v603
        %v605 = vpop.f32.mrb[0].mxu0
        %v606 = vpop.f32.mrb[0].mxu0
        %v607 = vadd.f32 %v494, %v606
        %v608 = vpop.f32.mrb[0].mxu0
        %609 = vmatprep.mubr.bf16.mxu0 0
        %610 = vmatmul.mubr.bf16.gmra.mrb[0].mxu0 %v519
        %v611 = vpop.f32.mrb[0].mxu0
        %v612 = vadd.f32 %v494, %v611
        %v613 = vpop.f32.mrb[0].mxu0
        %v614 = vpop.f32.mrb[0].mxu0
        %v615 = vadd.f32 %v494, %v614
        %v616 = vpop.f32.mrb[0].mxu0
        %617 = vdwg.mxu0
        %v618 = vld [vmem:[%s5] sm:$0x1]
        %v620 = vlaneseq
        %v621 = vshrl.u32 %v620, 7
        %v622 = vsub.s32 0, %v621
        %v623 = vrot.slane %v618, %v622
        %625 = vmatprep.subr.bf16.mxu0 0
        %626 = vmatpush1.bf16.msra.mxu0 %v481
        %627 = vmatprep.subr.bf16.mxu0 0
        %628 = vmatpush1.bf16.msra.mxu0 %v482
        %629 = vmatprep.subr.bf16.mxu0 0
        %630 = vmatpush1.bf16.msra.mxu0 0
        %631 = vmatprep.subr.bf16.mxu0 0
        %632 = vmatpush1.bf16.msra.mxu0 0
        %633 = vmatprep.subr.bf16.mxu0 0
        %634 = vmatpush1.bf16.msra.mxu0 0
        %635 = vmatprep.subr.bf16.mxu0 0
        %636 = vmatpush1.bf16.msra.mxu0 0
        %637 = vmatprep.subr.bf16.mxu0 0
        %638 = vmatpush1.bf16.msra.mxu0 0
        %639 = vmatprep.subr.bf16.mxu0 0
        %640 = vmatpush1.bf16.msra.mxu0 0
        %641 = vmatprep.subr.bf16.mxu0 0
        %642 = vmatpush1.bf16.msra.mxu0 0
        %643 = vmatprep.subr.bf16.mxu0 0
        %644 = vmatpush1.bf16.msra.mxu0 0
        %645 = vmatprep.subr.bf16.mxu0 0
        %646 = vmatpush1.bf16.msra.mxu0 0
        %647 = vmatprep.subr.bf16.mxu0 0
        %648 = vmatpush1.bf16.msra.mxu0 0
        %649 = vmatprep.subr.bf16.mxu0 0
        %650 = vmatpush1.bf16.msra.mxu0 0
        %651 = vmatprep.subr.bf16.mxu0 0
        %652 = vmatpush1.bf16.msra.mxu0 0
        %653 = vmatprep.subr.bf16.mxu0 0
        %654 = vmatpush1.bf16.msra.mxu0 0
        %655 = vmatprep.subr.bf16.mxu0 0
        %656 = vmatpush1.bf16.msra.mxu0 0
        %657 = vmatprep.mubr.bf16.mxu0 0
        %658 = vmatmul.mubr.bf16.gmra.mrb[0].mxu0 %v498
        %v659 = vpop.f32.mrb[0].mxu0
        %v660 = vadd.f32 %v623, %v659
        %v661 = vpop.f32.mrb[0].mxu0
        %v662 = vpop.f32.mrb[0].mxu0
        %v663 = vadd.f32 %v623, %v662
        %v664 = vpop.f32.mrb[0].mxu0
        %665 = vmatprep.mubr.bf16.mxu0 0
        %666 = vmatmul.mubr.bf16.gmra.mrb[0].mxu0 %v501
        %v667 = vpop.f32.mrb[0].mxu0
        %v668 = vadd.f32 %v623, %v667
        %v669 = vpop.f32.mrb[0].mxu0
        %v670 = vpop.f32.mrb[0].mxu0
        %v671 = vadd.f32 %v623, %v670
        %v672 = vpop.f32.mrb[0].mxu0
        %673 = vmatprep.mubr.bf16.mxu0 0
        %674 = vmatmul.mubr.bf16.gmra.mrb[0].mxu0 %v504
        %v675 = vpop.f32.mrb[0].mxu0
        %v676 = vadd.f32 %v623, %v675
        %v677 = vpop.f32.mrb[0].mxu0
        %v678 = vpop.f32.mrb[0].mxu0
        %v679 = vadd.f32 %v623, %v678
        %v680 = vpop.f32.mrb[0].mxu0
        %681 = vmatprep.mubr.bf16.mxu0 0
        %682 = vmatmul.mubr.bf16.gmra.mrb[0].mxu0 %v507
        %v683 = vpop.f32.mrb[0].mxu0
        %v684 = vadd.f32 %v623, %v683
        %v685 = vpop.f32.mrb[0].mxu0
        %v686 = vpop.f32.mrb[0].mxu0
        %v687 = vadd.f32 %v623, %v686
        %v688 = vpop.f32.mrb[0].mxu0
        %689 = vmatprep.mubr.bf16.mxu0 0
        %690 = vmatmul.mubr.bf16.gmra.mrb[0].mxu0 %v510
        %v691 = vpop.f32.mrb[0].mxu0
        %v692 = vadd.f32 %v623, %v691
        %v693 = vpop.f32.mrb[0].mxu0
        %v694 = vpop.f32.mrb[0].mxu0
        %v695 = vadd.f32 %v623, %v694
        %v696 = vpop.f32.mrb[0].mxu0
        %697 = vmatprep.mubr.bf16.mxu0 0
        %698 = vmatmul.mubr.bf16.gmra.mrb[0].mxu0 %v513
        %v699 = vpop.f32.mrb[0].mxu0
        %v700 = vadd.f32 %v623, %v699
        %v701 = vpop.f32.mrb[0].mxu0
        %v702 = vpop.f32.mrb[0].mxu0
        %v703 = vadd.f32 %v623, %v702
        %v704 = vpop.f32.mrb[0].mxu0
        %705 = vmatprep.mubr.bf16.mxu0 0
        %706 = vmatmul.mubr.bf16.gmra.mrb[0].mxu0 %v516
        %v707 = vpop.f32.mrb[0].mxu0
        %v708 = vadd.f32 %v623, %v707
        %v709 = vpop.f32.mrb[0].mxu0
        %v710 = vpop.f32.mrb[0].mxu0
        %v711 = vadd.f32 %v623, %v710
        %v712 = vpop.f32.mrb[0].mxu0
        %713 = vmatprep.mubr.bf16.mxu0 0
        %714 = vmatmul.mubr.bf16.gmra.mrb[0].mxu0 %v519
        %v715 = vpop.f32.mrb[0].mxu0
        %v716 = vadd.f32 %v623, %v715
        %v717 = vpop.f32.mrb[0].mxu0
        %v718 = vpop.f32.mrb[0].mxu0
        %v719 = vadd.f32 %v623, %v718
        %v720 = vpop.f32.mrb[0].mxu0
        %721 = vdwg.mxu0
        %v722 = vld [vmem:[%s6] sm:$0x1]
        %v724 = vlaneseq
        %v725 = vshrl.u32 %v724, 7
        %v726 = vsub.s32 0, %v725
        %v727 = vrot.slane %v722, %v726
        %729 = vmatprep.subr.bf16.mxu0 0
        %730 = vmatpush1.bf16.msra.mxu0 %v487
        %731 = vmatprep.subr.bf16.mxu0 0
        %732 = vmatpush1.bf16.msra.mxu0 %v488
        %733 = vmatprep.subr.bf16.mxu0 0
        %734 = vmatpush1.bf16.msra.mxu0 0
        %735 = vmatprep.subr.bf16.mxu0 0
        %736 = vmatpush1.bf16.msra.mxu0 0
        %737 = vmatprep.subr.bf16.mxu0 0
        %738 = vmatpush1.bf16.msra.mxu0 0
        %739 = vmatprep.subr.bf16.mxu0 0
        %740 = vmatpush1.bf16.msra.mxu0 0
        %741 = vmatprep.subr.bf16.mxu0 0
        %742 = vmatpush1.bf16.msra.mxu0 0
        %743 = vmatprep.subr.bf16.mxu0 0
        %744 = vmatpush1.bf16.msra.mxu0 0
        %745 = vmatprep.subr.bf16.mxu0 0
        %746 = vmatpush1.bf16.msra.mxu0 0
        %747 = vmatprep.subr.bf16.mxu0 0
        %748 = vmatpush1.bf16.msra.mxu0 0
        %749 = vmatprep.subr.bf16.mxu0 0
        %750 = vmatpush1.bf16.msra.mxu0 0
        %751 = vmatprep.subr.bf16.mxu0 0
        %752 = vmatpush1.bf16.msra.mxu0 0
        %753 = vmatprep.subr.bf16.mxu0 0
        %754 = vmatpush1.bf16.msra.mxu0 0
        %755 = vmatprep.subr.bf16.mxu0 0
        %756 = vmatpush1.bf16.msra.mxu0 0
        %757 = vmatprep.subr.bf16.mxu0 0
        %758 = vmatpush1.bf16.msra.mxu0 0
        %759 = vmatprep.subr.bf16.mxu0 0
        %760 = vmatpush1.bf16.msra.mxu0 0
        %761 = vmatprep.mubr.bf16.mxu0 0
        %762 = vmatmul.mubr.bf16.gmra.mrb[0].mxu0 %v498
        %v763 = vpop.f32.mrb[0].mxu0
        %v764 = vadd.f32 %v727, %v763
        %v765 = vpop.f32.mrb[0].mxu0
        %v766 = vpop.f32.mrb[0].mxu0
        %v767 = vadd.f32 %v727, %v766
        %v768 = vpop.f32.mrb[0].mxu0
        %769 = vmatprep.mubr.bf16.mxu0 0
        %770 = vmatmul.mubr.bf16.gmra.mrb[0].mxu0 %v501
        %v771 = vpop.f32.mrb[0].mxu0
        %v772 = vadd.f32 %v727, %v771
        %v773 = vpop.f32.mrb[0].mxu0
        %v774 = vpop.f32.mrb[0].mxu0
        %v775 = vadd.f32 %v727, %v774
        %v776 = vpop.f32.mrb[0].mxu0
        %777 = vmatprep.mubr.bf16.mxu0 0
        %778 = vmatmul.mubr.bf16.gmra.mrb[0].mxu0 %v504
        %v779 = vpop.f32.mrb[0].mxu0
        %v780 = vadd.f32 %v727, %v779
        %v781 = vpop.f32.mrb[0].mxu0
        %v782 = vpop.f32.mrb[0].mxu0
        %v783 = vadd.f32 %v727, %v782
        %v784 = vpop.f32.mrb[0].mxu0
        %785 = vmatprep.mubr.bf16.mxu0 0
        %786 = vmatmul.mubr.bf16.gmra.mrb[0].mxu0 %v507
        %v787 = vpop.f32.mrb[0].mxu0
        %v788 = vadd.f32 %v727, %v787
        %v789 = vpop.f32.mrb[0].mxu0
        %v790 = vpop.f32.mrb[0].mxu0
        %v791 = vadd.f32 %v727, %v790
        %v792 = vpop.f32.mrb[0].mxu0
        %793 = vmatprep.mubr.bf16.mxu0 0
        %794 = vmatmul.mubr.bf16.gmra.mrb[0].mxu0 %v510
        %v795 = vpop.f32.mrb[0].mxu0
        %v796 = vadd.f32 %v727, %v795
        %v797 = vpop.f32.mrb[0].mxu0
        %v798 = vpop.f32.mrb[0].mxu0
        %v799 = vadd.f32 %v727, %v798
        %v800 = vpop.f32.mrb[0].mxu0
        %801 = vmatprep.mubr.bf16.mxu0 0
        %802 = vmatmul.mubr.bf16.gmra.mrb[0].mxu0 %v513
        %v803 = vpop.f32.mrb[0].mxu0
        %v804 = vadd.f32 %v727, %v803
        %v805 = vpop.f32.mrb[0].mxu0
        %v806 = vpop.f32.mrb[0].mxu0
        %v807 = vadd.f32 %v727, %v806
        %v808 = vpop.f32.mrb[0].mxu0
        %809 = vmatprep.mubr.bf16.mxu0 0
        %810 = vmatmul.mubr.bf16.gmra.mrb[0].mxu0 %v516
        %v811 = vpop.f32.mrb[0].mxu0
        %v812 = vadd.f32 %v727, %v811
        %v813 = vpop.f32.mrb[0].mxu0
        %v814 = vpop.f32.mrb[0].mxu0
        %v815 = vadd.f32 %v727, %v814
        %v816 = vpop.f32.mrb[0].mxu0
        %817 = vmatprep.mubr.bf16.mxu0 0
        %818 = vmatmul.mubr.bf16.gmra.mrb[0].mxu0 %v519
        %v819 = vpop.f32.mrb[0].mxu0
        %v820 = vadd.f32 %v727, %v819
        %v821 = vpop.f32.mrb[0].mxu0
        %v822 = vpop.f32.mrb[0].mxu0
        %v823 = vadd.f32 %v727, %v822
        %v824 = vpop.f32.mrb[0].mxu0
        %825 = vdwg.mxu0
        %v826 = vpack.c.bf16 %v559, %v556
        %v827 = vpack.c.bf16 %v567, %v564
        %v828 = vpack.c.bf16 %v575, %v572
        %v829 = vpack.c.bf16 %v583, %v580
        %v830 = vpack.c.bf16 %v591, %v588
        %v831 = vpack.c.bf16 %v599, %v596
        %v832 = vpack.c.bf16 %v607, %v604
        %v833 = vpack.c.bf16 %v615, %v612
        %v842 = vunpack.c.l.b16 %v826
        %v843 = vunpack.c.h.b16 %v826
        %v844 = vunpack.c.l.b16 %v827
        %v845 = vunpack.c.h.b16 %v827
        %v846 = vunpack.c.l.b16 %v828
        %v847 = vunpack.c.h.b16 %v828
        %v848 = vunpack.c.l.b16 %v829
        %v849 = vunpack.c.h.b16 %v829
        %v850 = vunpack.c.l.b16 %v830
        %v851 = vunpack.c.h.b16 %v830
        %v852 = vunpack.c.l.b16 %v831
        %v853 = vunpack.c.h.b16 %v831
        %v854 = vunpack.c.l.b16 %v832
        %v855 = vunpack.c.h.b16 %v832
        %v856 = vunpack.c.l.b16 %v833
        %v857 = vunpack.c.h.b16 %v833
        %v858 = vpack.c.b16 %v842, %v842
        %v859 = vpack.c.b16 %v843, %v843
        %v860 = vpack.c.b16 %v844, %v844
        %v861 = vpack.c.b16 %v845, %v845
        %v862 = vpack.c.b16 %v846, %v846
        %v863 = vpack.c.b16 %v847, %v847
        %v864 = vpack.c.b16 %v848, %v848
        %v865 = vpack.c.b16 %v849, %v849
        %v866 = vpack.c.b16 %v850, %v850
        %v867 = vpack.c.b16 %v851, %v851
        %v868 = vpack.c.b16 %v852, %v852
        %v869 = vpack.c.b16 %v853, %v853
        %v870 = vpack.c.b16 %v854, %v854
        %v871 = vpack.c.b16 %v855, %v855
        %v872 = vpack.c.b16 %v856, %v856
        %v873 = vpack.c.b16 %v857, %v857
        %vm890 = vcmask 27648
        %891 = vst.msk [vmem:[%s404] sm:$0xf] %vm890, %v858
        %892 = vst.msk [vmem:[%s404 + $0x4] sm:$0xf] %vm890, %v859
        %893 = vst.msk [vmem:[%s404 + $0x8] sm:$0xf] %vm890, %v860
        %894 = vst.msk [vmem:[%s404 + $0xc] sm:$0xf] %vm890, %v861
        %895 = vst.msk [vmem:[%s404 + $0x10] sm:$0xf] %vm890, %v862
        %896 = vst.msk [vmem:[%s404 + $0x14] sm:$0xf] %vm890, %v863
        %897 = vst.msk [vmem:[%s404 + $0x18] sm:$0xf] %vm890, %v864
        %898 = vst.msk [vmem:[%s404 + $0x1c] sm:$0xf] %vm890, %v865
        %899 = vst.msk [vmem:[%s404 + $0x20] sm:$0xf] %vm890, %v866
        %900 = vst.msk [vmem:[%s404 + $0x24] sm:$0xf] %vm890, %v867
        %901 = vst.msk [vmem:[%s404 + $0x28] sm:$0xf] %vm890, %v868
        %902 = vst.msk [vmem:[%s404 + $0x2c] sm:$0xf] %vm890, %v869
        %903 = vst.msk [vmem:[%s404 + $0x30] sm:$0xf] %vm890, %v870
        %904 = vst.msk [vmem:[%s404 + $0x34] sm:$0xf] %vm890, %v871
        %905 = vst.msk [vmem:[%s404 + $0x38] sm:$0xf] %vm890, %v872
        %906 = vst.msk [vmem:[%s404 + $0x3c] sm:$0xf] %vm890, %v873
        %v907 = vpack.c.bf16 %v663, %v660
        %v908 = vpack.c.bf16 %v671, %v668
        %v909 = vpack.c.bf16 %v679, %v676
        %v910 = vpack.c.bf16 %v687, %v684
        %v911 = vpack.c.bf16 %v695, %v692
        %v912 = vpack.c.bf16 %v703, %v700
        %v913 = vpack.c.bf16 %v711, %v708
        %v914 = vpack.c.bf16 %v719, %v716
        %v923 = vunpack.c.l.b16 %v907
        %v924 = vunpack.c.h.b16 %v907
        %v925 = vunpack.c.l.b16 %v908
        %v926 = vunpack.c.h.b16 %v908
        %v927 = vunpack.c.l.b16 %v909
        %v928 = vunpack.c.h.b16 %v909
        %v929 = vunpack.c.l.b16 %v910
        %v930 = vunpack.c.h.b16 %v910
        %v931 = vunpack.c.l.b16 %v911
        %v932 = vunpack.c.h.b16 %v911
        %v933 = vunpack.c.l.b16 %v912
        %v934 = vunpack.c.h.b16 %v912
        %v935 = vunpack.c.l.b16 %v913
        %v936 = vunpack.c.h.b16 %v913
        %v937 = vunpack.c.l.b16 %v914
        %v938 = vunpack.c.h.b16 %v914
        %v939 = vpack.c.b16 %v923, %v923
        %v940 = vpack.c.b16 %v924, %v924
        %v941 = vpack.c.b16 %v925, %v925
        %v942 = vpack.c.b16 %v926, %v926
        %v943 = vpack.c.b16 %v927, %v927
        %v944 = vpack.c.b16 %v928, %v928
        %v945 = vpack.c.b16 %v929, %v929
        %v946 = vpack.c.b16 %v930, %v930
        %v947 = vpack.c.b16 %v931, %v931
        %v948 = vpack.c.b16 %v932, %v932
        %v949 = vpack.c.b16 %v933, %v933
        %v950 = vpack.c.b16 %v934, %v934
        %v951 = vpack.c.b16 %v935, %v935
        %v952 = vpack.c.b16 %v936, %v936
        %v953 = vpack.c.b16 %v937, %v937
        %v954 = vpack.c.b16 %v938, %v938
        %971 = vst.msk [vmem:[%s414] sm:$0xf] %vm890, %v939
        %972 = vst.msk [vmem:[%s414 + $0x4] sm:$0xf] %vm890, %v940
        %973 = vst.msk [vmem:[%s414 + $0x8] sm:$0xf] %vm890, %v941
        %974 = vst.msk [vmem:[%s414 + $0xc] sm:$0xf] %vm890, %v942
        %975 = vst.msk [vmem:[%s414 + $0x10] sm:$0xf] %vm890, %v943
        %976 = vst.msk [vmem:[%s414 + $0x14] sm:$0xf] %vm890, %v944
        %977 = vst.msk [vmem:[%s414 + $0x18] sm:$0xf] %vm890, %v945
        %978 = vst.msk [vmem:[%s414 + $0x1c] sm:$0xf] %vm890, %v946
        %979 = vst.msk [vmem:[%s414 + $0x20] sm:$0xf] %vm890, %v947
        %980 = vst.msk [vmem:[%s414 + $0x24] sm:$0xf] %vm890, %v948
        %981 = vst.msk [vmem:[%s414 + $0x28] sm:$0xf] %vm890, %v949
        %982 = vst.msk [vmem:[%s414 + $0x2c] sm:$0xf] %vm890, %v950
        %983 = vst.msk [vmem:[%s414 + $0x30] sm:$0xf] %vm890, %v951
        %984 = vst.msk [vmem:[%s414 + $0x34] sm:$0xf] %vm890, %v952
        %985 = vst.msk [vmem:[%s414 + $0x38] sm:$0xf] %vm890, %v953
        %986 = vst.msk [vmem:[%s414 + $0x3c] sm:$0xf] %vm890, %v954
        %v987 = vpack.c.bf16 %v767, %v764
        %v988 = vpack.c.bf16 %v775, %v772
        %v989 = vpack.c.bf16 %v783, %v780
        %v990 = vpack.c.bf16 %v791, %v788
        %v991 = vpack.c.bf16 %v799, %v796
        %v992 = vpack.c.bf16 %v807, %v804
        %v993 = vpack.c.bf16 %v815, %v812
        %v994 = vpack.c.bf16 %v823, %v820
        %v1003 = vunpack.c.l.b16 %v987
        %v1004 = vunpack.c.h.b16 %v987
        %v1005 = vunpack.c.l.b16 %v988
        %v1006 = vunpack.c.h.b16 %v988
        %v1007 = vunpack.c.l.b16 %v989
        %v1008 = vunpack.c.h.b16 %v989
        %v1009 = vunpack.c.l.b16 %v990
        %v1010 = vunpack.c.h.b16 %v990
        %v1011 = vunpack.c.l.b16 %v991
        %v1012 = vunpack.c.h.b16 %v991
        %v1013 = vunpack.c.l.b16 %v992
        %v1014 = vunpack.c.h.b16 %v992
        %v1015 = vunpack.c.l.b16 %v993
        %v1016 = vunpack.c.h.b16 %v993
        %v1017 = vunpack.c.l.b16 %v994
        %v1018 = vunpack.c.h.b16 %v994
        %v1019 = vpack.c.b16 %v1003, %v1003
        %v1020 = vpack.c.b16 %v1004, %v1004
        %v1021 = vpack.c.b16 %v1005, %v1005
        %v1022 = vpack.c.b16 %v1006, %v1006
        %v1023 = vpack.c.b16 %v1007, %v1007
        %v1024 = vpack.c.b16 %v1008, %v1008
        %v1025 = vpack.c.b16 %v1009, %v1009
        %v1026 = vpack.c.b16 %v1010, %v1010
        %v1027 = vpack.c.b16 %v1011, %v1011
        %v1028 = vpack.c.b16 %v1012, %v1012
        %v1029 = vpack.c.b16 %v1013, %v1013
        %v1030 = vpack.c.b16 %v1014, %v1014
        %v1031 = vpack.c.b16 %v1015, %v1015
        %v1032 = vpack.c.b16 %v1016, %v1016
        %v1033 = vpack.c.b16 %v1017, %v1017
        %v1034 = vpack.c.b16 %v1018, %v1018
        %vm1051 = vcmask 257024
        %1052 = vst.msk [vmem:[%s424] sm:$0xf] %vm1051, %v1019
        %1053 = vst.msk [vmem:[%s424 + $0x4] sm:$0xf] %vm1051, %v1020
        %1054 = vst.msk [vmem:[%s424 + $0x8] sm:$0xf] %vm1051, %v1021
        %1055 = vst.msk [vmem:[%s424 + $0xc] sm:$0xf] %vm1051, %v1022
        %1056 = vst.msk [vmem:[%s424 + $0x10] sm:$0xf] %vm1051, %v1023
        %1057 = vst.msk [vmem:[%s424 + $0x14] sm:$0xf] %vm1051, %v1024
        %1058 = vst.msk [vmem:[%s424 + $0x18] sm:$0xf] %vm1051, %v1025
        %1059 = vst.msk [vmem:[%s424 + $0x1c] sm:$0xf] %vm1051, %v1026
        %1060 = vst.msk [vmem:[%s424 + $0x20] sm:$0xf] %vm1051, %v1027
        %1061 = vst.msk [vmem:[%s424 + $0x24] sm:$0xf] %vm1051, %v1028
        %1062 = vst.msk [vmem:[%s424 + $0x28] sm:$0xf] %vm1051, %v1029
        %1063 = vst.msk [vmem:[%s424 + $0x2c] sm:$0xf] %vm1051, %v1030
        %1064 = vst.msk [vmem:[%s424 + $0x30] sm:$0xf] %vm1051, %v1031
        %1065 = vst.msk [vmem:[%s424 + $0x34] sm:$0xf] %vm1051, %v1032
        %1066 = vst.msk [vmem:[%s424 + $0x38] sm:$0xf] %vm1051, %v1033
        %1067 = vst.msk [vmem:[%s424 + $0x3c] sm:$0xf] %vm1051, %v1034
        %s1068 = smul.u32 16, %s29
        %p1069 = scmp.lt.s32.totalorder %s28, 1
        %s1070 = scalar_select %p1069, %s28, 1
        %p1071 = scmp.lt.s32.totalorder %s1068, 31
        %s1072 = scalar_select %p1071, %s1068, 31
        %s1073 = smul.addr %s1070, 32
        %s1074 = sadd.s32 %s1072, %s1073
        %s1075 = smul.addr %s1074, 4
        %s1076 = scalar_lea.vmem %s7, %s1075
        %s1077 = smul.u32 16, %s29
        %p1078 = scmp.lt.s32.totalorder %s28, 1
        %s1079 = scalar_select %p1078, %s28, 1
        %p1080 = scmp.lt.s32.totalorder %s1077, 31
        %s1081 = scalar_select %p1080, %s1077, 31
        %s1082 = smul.addr %s1079, 32
        %s1083 = sadd.s32 %s1081, %s1082
        %s1084 = smul.addr %s1083, 4
        %s1085 = scalar_lea.vmem %s8, %s1084
        %s1086 = smul.u32 16, %s29
        %p1087 = scmp.lt.s32.totalorder %s28, 1
        %s1088 = scalar_select %p1087, %s28, 1
        %p1089 = scmp.lt.s32.totalorder %s1086, 31
        %s1090 = scalar_select %p1089, %s1086, 31
        %s1091 = smul.addr %s1088, 32
        %s1092 = sadd.s32 %s1090, %s1091
        %s1093 = smul.addr %s1092, 4
        %s1094 = scalar_lea.vmem %s9, %s1093
        // Predicated region
        $region53: #{tpu_custom_call.1} parent=47 // pred_check
          %p1095 = pneg %p210
        $region54: #{tpu_custom_call.1} parent=47 // pred_check_branch
          %1097 = sbr.rel (%p1095) target = $region56
        $region55: #{tpu_custom_call.1} parent=47 // pred_region
          %s1098 = smul.u32 16, %s29
        $region56: #{tpu_custom_call.1} parent=47 // pred_fallthru
          _
        // Predicated region
        $region57: #{tpu_custom_call.1} parent=47 // pred_check
          %p1099 = pneg %p238
        $region58: #{tpu_custom_call.1} parent=47 // pred_check_branch
          %1101 = sbr.rel (%p1099) target = $region60
        $region59: #{tpu_custom_call.1} parent=47 // pred_region
          %s1102 = smul.u32 16, %s29
        $region60: #{tpu_custom_call.1} parent=47 // pred_fallthru
          _
        // Predicated region
        $region61: #{tpu_custom_call.1} parent=47 // pred_check
          %p1103 = pneg %p266
        $region62: #{tpu_custom_call.1} parent=47 // pred_check_branch
          %1105 = sbr.rel (%p1103) target = $region64
        $region63: #{tpu_custom_call.1} parent=47 // pred_region
          %s1106 = smul.u32 16, %s29
        $region64: #{tpu_custom_call.1} parent=47 // pred_fallthru
          _
      $region48: #{tpu_custom_call.1} parent=5 // pred_fallthru
        _
      %p1107 = scmp.le.s32.totalorder 2, %s19
      // Predicated region
      $region65: #{tpu_custom_call.1} parent=5 // pred_check
        %p1108 = pneg %p1107
      $region66: #{tpu_custom_call.1} parent=5 // pred_check_branch
        %1110 = sbr.rel (%p1108) target = $region68
      $region67: #{tpu_custom_call.1} parent=5 // pred_region
        %s1111 = ssub.s32 %s19, 2
        // Predicated region
        $region69: #{tpu_custom_call.1} parent=67 // pred_check
          %p1112 = pneg %p216
        $region70: #{tpu_custom_call.1} parent=67 // pred_check_branch
          %1114 = sbr.rel (%p1112) target = $region72
        $region71: #{tpu_custom_call.1} parent=67 // pred_region
          %s1115 = smul.u32 16, %s31
          %p1116 = scmp.lt.s32.totalorder %s30, 1
          %s1117 = scalar_select %p1116, %s30, 1
          %p1118 = scmp.lt.s32.totalorder %s1115, 31
          %s1119 = scalar_select %p1118, %s1115, 31
          %s1120 = smul.addr %s1117, 32
          %s1121 = sadd.s32 %s1119, %s1120
          %s1122 = smul.addr %s1121, 4
          %s1123 = scalar_lea.vmem %s7, %s1122
        $region72: #{tpu_custom_call.1} parent=67 // pred_fallthru
          _
        // Predicated region
        $region73: #{tpu_custom_call.1} parent=67 // pred_check
          %p1124 = pneg %p244
        $region74: #{tpu_custom_call.1} parent=67 // pred_check_branch
          %1126 = sbr.rel (%p1124) target = $region76
        $region75: #{tpu_custom_call.1} parent=67 // pred_region
          %s1127 = smul.u32 16, %s31
          %p1128 = scmp.lt.s32.totalorder %s30, 1
          %s1129 = scalar_select %p1128, %s30, 1
          %p1130 = scmp.lt.s32.totalorder %s1127, 31
          %s1131 = scalar_select %p1130, %s1127, 31
          %s1132 = smul.addr %s1129, 32
          %s1133 = sadd.s32 %s1131, %s1132
          %s1134 = smul.addr %s1133, 4
          %s1135 = scalar_lea.vmem %s8, %s1134
        $region76: #{tpu_custom_call.1} parent=67 // pred_fallthru
          _
        // Predicated region
        $region77: #{tpu_custom_call.1} parent=67 // pred_check
          %p1136 = pneg %p272
        $region78: #{tpu_custom_call.1} parent=67 // pred_check_branch
          %1138 = sbr.rel (%p1136) target = $region80
        $region79: #{tpu_custom_call.1} parent=67 // pred_region
          %s1139 = smul.u32 16, %s31
          %p1140 = scmp.lt.s32.totalorder %s30, 1
          %s1141 = scalar_select %p1140, %s30, 1
          %p1142 = scmp.lt.s32.totalorder %s1139, 31
          %s1143 = scalar_select %p1142, %s1139, 31
          %s1144 = smul.addr %s1141, 32
          %s1145 = sadd.s32 %s1143, %s1144
          %s1146 = smul.addr %s1145, 4
          %s1147 = scalar_lea.vmem %s9, %s1146
        $region80: #{tpu_custom_call.1} parent=67 // pred_fallthru
          _
      $region68: #{tpu_custom_call.1} parent=5 // pred_fallthru
        _
    $region6: #{tpu_custom_call.1} parent=1 // loop_footer
      %s23 = sadd.s32 1, %s19
    $region7: #{tpu_custom_call.1} parent=1 // loop_footer_branch
      %18 = sbr.rel target = $region3
    $region8: #{tpu_custom_call.1} parent=1 // loop_exit
      _
    %1148 = vsyncpa [#allocation3], 1
    %s1149 = scalar_lea.sflag [#allocation3], 1
    %1150 = vsyncpa %s1149, 1

</llo_original>
